<compile_context>
chip_gen: v6e
topology: v6e:2x2x1
jax: 0.10.0
libtpu: 0.0.40
codegen_flags: <defaults>
</compile_context>

<pallas_src>
import functools

import jax
import jax.numpy as jnp
from jax.experimental import pallas as pl
from jax.experimental.pallas import tpu as pltpu


def mlp_kernel(x_ref, w1_ref, b1_ref, w2_ref, b2_ref, w3_ref, b3_ref, o_ref):
    x = x_ref[...]

    # layer 1: Linear(input_dim, 32) + ReLU   (fp32 MXU accumulation)
    h1 = jnp.dot(x, w1_ref[...], preferred_element_type=jnp.float32) + b1_ref[...]
    h1 = jnp.maximum(h1, 0.0)

    # layer 2: Linear(32, 64) + ReLU
    h2 = jnp.dot(h1.astype(w2_ref.dtype), w2_ref[...],
                 preferred_element_type=jnp.float32) + b2_ref[...]
    h2 = jnp.maximum(h2, 0.0)

    # layer 3: Linear(64, output_dim)  (true columns only — no lane padding)
    out = jnp.dot(h2.astype(w3_ref.dtype), w3_ref[...],
                  preferred_element_type=jnp.float32) + b3_ref[...]
    o_ref[...] = out.astype(o_ref.dtype)


def _round_up(n, m):
    return ((n + m - 1) // m) * m


def _choose_batch_tile(batch, block_batch, sub):
    """Pick the batch tile size.

    - Full-batch single tile when the batch fits (always layout-legal: block dim ==
      full array dim), except large batches are split in >=2 steps so the 'parallel'
      grid axis can use both TensorCores on v7x.
    - Otherwise a sublane-rounded tile; the ragged last block is masked by Pallas.
    """
    if batch <= block_batch:
        if batch >= 1024:  # worth >=2 grid steps (v7x dual-TC); overhead is tiny anyway
            return _round_up(pl.cdiv(batch, 2), sub)
        return batch
    return _round_up(block_batch, sub)


@functools.partial(jax.jit, static_argnames=("block_batch", "compute_dtype"))
def network_forward(x, params, *, block_batch=2048, compute_dtype=jnp.float32):
    """Forward pass of DQN.Network.

    params = (w1, b1, w2, b2, w3, b3) with w* stored as (in, out), b* as (1, out),
    so the kernel computes x @ W + b (same math as torch nn.Linear with W^T).
    """
    w1, b1, w2, b2, w3, b3 = params
    batch, in_dim = x.shape
    h1_dim, h2_dim, out_dim = w1.shape[1], w2.shape[1], w3.shape[1]

    compute_dtype = jnp.dtype(compute_dtype)
    sub = 16 if compute_dtype == jnp.bfloat16 else 8  # packed sublanes for bf16

    # Optional reduced-precision operands (bf16 on v6e/v7x); fp32 accumulation is
    # forced in-kernel via preferred_element_type. No-op casts cost nothing.
    cast = lambda a: a if a.dtype == compute_dtype else a.astype(compute_dtype)
    x_c = cast(x)
    w1c, w2c, w3c = cast(w1), cast(w2), cast(w3)

    tb = _choose_batch_tile(batch, block_batch, sub)
    grid = (pl.cdiv(batch, tb),)

    # Scheduler hint: 3 tiny GEMMs, streaming x / writing the true-width output,
    # resident weights (read once).
    itemsize = compute_dtype.itemsize
    flops = 2 * batch * (in_dim * h1_dim + h1_dim * h2_dim + h2_dim * out_dim)
    bytes_accessed = (
        (x_c.size + w1c.size + w2c.size + w3c.size) * itemsize
        + (b1.size + b2.size + b3.size) * 4
        + batch * out_dim * 4
    )

    out = pl.pallas_call(
        mlp_kernel,
        out_shape=jax.ShapeDtypeStruct((batch, out_dim), jnp.float32),
        grid=grid,
        in_specs=[
            pl.BlockSpec((tb, in_dim), lambda i: (i, 0)),   # x tile, pipelined
            pl.BlockSpec(w1c.shape, lambda i: (0, 0)),      # resident weights/biases
            pl.BlockSpec(b1.shape, lambda i: (0, 0)),
            pl.BlockSpec(w2c.shape, lambda i: (0, 0)),
            pl.BlockSpec(b2.shape, lambda i: (0, 0)),
            pl.BlockSpec(w3c.shape, lambda i: (0, 0)),
            pl.BlockSpec(b3.shape, lambda i: (0, 0)),
        ],
        out_specs=pl.BlockSpec((tb, out_dim), lambda i: (i, 0)),  # true-width writeback
        compiler_params=pltpu.CompilerParams(
            dimension_semantics=("parallel",),              # 2-TC sharding on v7x
        ),
        cost_estimate=pl.CostEstimate(
            flops=flops, transcendentals=0, bytes_accessed=bytes_accessed
        ),
    )(x_c, w1c, b1, w2c, b2, w3c, b3)

    return out


def init_params(key, input_dim, output_dim):
    """Deterministic init mirroring nn.Linear shapes (weights stored transposed)."""
    ks = jax.random.split(key, 6)

    def linear(kw, kb, fan_in, fan_out):
        bound = 1.0 / jnp.sqrt(fan_in)
        w = jax.random.uniform(kw, (fan_in, fan_out), jnp.float32, -bound, bound)
        b = jax.random.uniform(kb, (1, fan_out), jnp.float32, -bound, bound)
        return w, b

    w1, b1 = linear(ks[0], ks[1], input_dim, 32)
    w2, b2 = linear(ks[2], ks[3], 32, 64)
    w3, b3 = linear(ks[4], ks[5], 64, output_dim)
    return (w1, b1, w2, b2, w3, b3)


def _ref_forward(x, params):
    w1, b1, w2, b2, w3, b3 = params
    h = jnp.maximum(x @ w1 + b1, 0.0)
    h = jnp.maximum(h @ w2 + b2, 0.0)
    return h @ w3 + b3


if __name__ == "__main__":
    key = jax.random.PRNGKey(0)
    k_x, k_p = jax.random.split(key)

    batch, input_dim, output_dim = 2, 16, 4
    x = jax.random.normal(k_x, (batch, input_dim), jnp.float32)
    params = init_params(k_p, input_dim, output_dim)

    # Small batch, single full-batch tile, fp32 operands (tight tolerance).
    out = network_forward(x, params)
    jax.block_until_ready(out)
    assert out.shape == (batch, output_dim)
    assert jnp.allclose(out, _ref_forward(x, params), atol=1e-5, rtol=1e-5)

    # Multi-step grid with a ragged last tile (1000 rows, 256-row tiles), fp32.
    batch2 = 1000
    x2 = jax.random.normal(jax.random.PRNGKey(1), (batch2, input_dim), jnp.float32)
    out2 = network_forward(x2, params, block_batch=256)
    jax.block_until_ready(out2)
    assert out2.shape == (batch2, output_dim)
    assert jnp.allclose(out2, _ref_forward(x2, params), atol=1e-5, rtol=1e-5)

    # bf16 operand path (recommended default on v6e/v7x); fp32 accumulation, so only
    # operand-rounding error remains -> relaxed tolerance.
    out3 = network_forward(x2, params, compute_dtype=jnp.bfloat16)
    jax.block_until_ready(out3)
    assert out3.shape == (batch2, output_dim)
    assert jnp.allclose(out3, _ref_forward(x2, params), atol=5e-2, rtol=5e-2)

    print("KERNEL_OK")
</pallas_src>

<mosaic_0001>
module attributes {stable_mosaic.version = 11 : i64} {
  func.func @mlp_kernel(%arg0: i32, %arg1: memref<2x16xf32, #tpu.memory_space<vmem>>, %arg2: memref<16x32xf32, #tpu.memory_space<vmem>>, %arg3: memref<1x32xf32, #tpu.memory_space<vmem>>, %arg4: memref<32x64xf32, #tpu.memory_space<vmem>>, %arg5: memref<1x64xf32, #tpu.memory_space<vmem>>, %arg6: memref<64x4xf32, #tpu.memory_space<vmem>>, %arg7: memref<1x4xf32, #tpu.memory_space<vmem>>, %arg8: memref<2x4xf32, #tpu.memory_space<vmem>>) attributes {dimension_semantics = [#tpu.dimension_semantics<parallel>], iteration_bounds = array<i64: 1>, scalar_prefetch = 0 : i64, scratch_operands = 0 : i64, tpu.core_type = #tpu.core_type<tc>, window_params = [{transform_indices = @transform_0, window_bounds = array<i64: 2, 16>}, {pipeline_mode = #tpu.pipeline_mode<synchronous>, transform_indices = @transform_1, window_bounds = array<i64: 16, 32>}, {pipeline_mode = #tpu.pipeline_mode<synchronous>, transform_indices = @transform_2, window_bounds = array<i64: 1, 32>}, {pipeline_mode = #tpu.pipeline_mode<synchronous>, transform_indices = @transform_3, window_bounds = array<i64: 32, 64>}, {pipeline_mode = #tpu.pipeline_mode<synchronous>, transform_indices = @transform_4, window_bounds = array<i64: 1, 64>}, {pipeline_mode = #tpu.pipeline_mode<synchronous>, transform_indices = @transform_5, window_bounds = array<i64: 64, 4>}, {pipeline_mode = #tpu.pipeline_mode<synchronous>, transform_indices = @transform_6, window_bounds = array<i64: 1, 4>}, {transform_indices = @transform_7, window_bounds = array<i64: 2, 4>}]} {
    %c0 = arith.constant 0 : index
    %c0_0 = arith.constant 0 : index
    %0 = vector.load %arg1[%c0, %c0_0] : memref<2x16xf32, #tpu.memory_space<vmem>>, vector<2x16xf32>
    %c0_1 = arith.constant 0 : index
    %c0_2 = arith.constant 0 : index
    %1 = vector.load %arg2[%c0_1, %c0_2] : memref<16x32xf32, #tpu.memory_space<vmem>>, vector<16x32xf32>
    %cst = arith.constant dense<0.000000e+00> : vector<2x32xf32>
    %2 = tpu.matmul %0, %1, %cst {dimension_numbers = #tpu.dot_dimension_numbers<[1], [0], [0], [1], [0, 0, 1, 1], [], []>} : vector<2x16xf32>, vector<16x32xf32>, vector<2x32xf32> -> vector<2x32xf32>
    %c0_3 = arith.constant 0 : index
    %c0_4 = arith.constant 0 : index
    %3 = vector.load %arg3[%c0_3, %c0_4] : memref<1x32xf32, #tpu.memory_space<vmem>>, vector<1x32xf32>
    %4 = vector.broadcast %3 : vector<1x32xf32> to vector<2x32xf32>
    %5 = arith.addf %2, %4 : vector<2x32xf32>
    %cst_5 = arith.constant 0.000000e+00 : f32
    %6 = vector.broadcast %cst_5 : f32 to vector<2x32xf32>
    %7 = arith.maximumf %5, %6 : vector<2x32xf32>
    %c0_6 = arith.constant 0 : index
    %c0_7 = arith.constant 0 : index
    %8 = vector.load %arg4[%c0_6, %c0_7] : memref<32x64xf32, #tpu.memory_space<vmem>>, vector<32x64xf32>
    %cst_8 = arith.constant dense<0.000000e+00> : vector<2x64xf32>
    %9 = tpu.matmul %7, %8, %cst_8 {dimension_numbers = #tpu.dot_dimension_numbers<[1], [0], [0], [1], [0, 0, 1, 1], [], []>} : vector<2x32xf32>, vector<32x64xf32>, vector<2x64xf32> -> vector<2x64xf32>
    %c0_9 = arith.constant 0 : index
    %c0_10 = arith.constant 0 : index
    %10 = vector.load %arg5[%c0_9, %c0_10] : memref<1x64xf32, #tpu.memory_space<vmem>>, vector<1x64xf32>
    %11 = vector.broadcast %10 : vector<1x64xf32> to vector<2x64xf32>
    %12 = arith.addf %9, %11 : vector<2x64xf32>
    %cst_11 = arith.constant 0.000000e+00 : f32
    %13 = vector.broadcast %cst_11 : f32 to vector<2x64xf32>
    %14 = arith.maximumf %12, %13 : vector<2x64xf32>
    %c0_12 = arith.constant 0 : index
    %c0_13 = arith.constant 0 : index
    %15 = vector.load %arg6[%c0_12, %c0_13] : memref<64x4xf32, #tpu.memory_space<vmem>>, vector<64x4xf32>
    %cst_14 = arith.constant dense<0.000000e+00> : vector<2x4xf32>
    %16 = tpu.matmul %14, %15, %cst_14 {dimension_numbers = #tpu.dot_dimension_numbers<[1], [0], [0], [1], [0, 0, 1, 1], [], []>} : vector<2x64xf32>, vector<64x4xf32>, vector<2x4xf32> -> vector<2x4xf32>
    %c0_15 = arith.constant 0 : index
    %c0_16 = arith.constant 0 : index
    %17 = vector.load %arg7[%c0_15, %c0_16] : memref<1x4xf32, #tpu.memory_space<vmem>>, vector<1x4xf32>
    %18 = vector.broadcast %17 : vector<1x4xf32> to vector<2x4xf32>
    %19 = arith.addf %16, %18 : vector<2x4xf32>
    %c0_17 = arith.constant 0 : index
    %c0_18 = arith.constant 0 : index
    %20 = vector.load %arg8[%c0_17, %c0_18] : memref<2x4xf32, #tpu.memory_space<vmem>>, vector<2x4xf32>
    tpu.vector_store %arg8[%c0_17, %c0_18], %19 {strides = array<i32>} : memref<2x4xf32, #tpu.memory_space<vmem>>, vector<2x4xf32>,
    return
  }
  func.func @transform_0(%arg0: i32) -> (i32, i32) {
    %c0_i32 = arith.constant 0 : i32
    %c0_i32_0 = arith.constant 0 : i32
    return %arg0, %c0_i32 : i32, i32
  }
  func.func @transform_1(%arg0: i32) -> (i32, i32) {
    %c0_i32 = arith.constant 0 : i32
    %c0_i32_0 = arith.constant 0 : i32
    %c0_i32_1 = arith.constant 0 : i32
    return %c0_i32, %c0_i32_0 : i32, i32
  }
  func.func @transform_2(%arg0: i32) -> (i32, i32) {
    %c0_i32 = arith.constant 0 : i32
    %c0_i32_0 = arith.constant 0 : i32
    %c0_i32_1 = arith.constant 0 : i32
    return %c0_i32, %c0_i32_0 : i32, i32
  }
  func.func @transform_3(%arg0: i32) -> (i32, i32) {
    %c0_i32 = arith.constant 0 : i32
    %c0_i32_0 = arith.constant 0 : i32
    %c0_i32_1 = arith.constant 0 : i32
    return %c0_i32, %c0_i32_0 : i32, i32
  }
  func.func @transform_4(%arg0: i32) -> (i32, i32) {
    %c0_i32 = arith.constant 0 : i32
    %c0_i32_0 = arith.constant 0 : i32
    %c0_i32_1 = arith.constant 0 : i32
    return %c0_i32, %c0_i32_0 : i32, i32
  }
  func.func @transform_5(%arg0: i32) -> (i32, i32) {
    %c0_i32 = arith.constant 0 : i32
    %c0_i32_0 = arith.constant 0 : i32
    %c0_i32_1 = arith.constant 0 : i32
    return %c0_i32, %c0_i32_0 : i32, i32
  }
  func.func @transform_6(%arg0: i32) -> (i32, i32) {
    %c0_i32 = arith.constant 0 : i32
    %c0_i32_0 = arith.constant 0 : i32
    %c0_i32_1 = arith.constant 0 : i32
    return %c0_i32, %c0_i32_0 : i32, i32
  }
  func.func @transform_7(%arg0: i32) -> (i32, i32) {
    %c0_i32 = arith.constant 0 : i32
    %c0_i32_0 = arith.constant 0 : i32
    return %arg0, %c0_i32 : i32, i32
  }
}

</mosaic_0001>

<llo_original>
// kernel: network_forward.1
$region0: #{network_forward.1}
  #allocation0 [shape = 'u32[]', space=smem, size = 0x4, offset = 0x4, fixed_abs, tag = 'smem constant byte address 0x4 - core index']
  #allocation1 [shape = 'u32[144,128]{1,0:T(1,128)}', space=vmem, size = 0x12000, scoped, tag = 'internal scratch']
  %s0 = inlined_call_operand.vmem [shape: f32[2,16], index: 0, kind: input, shape index: {}]
  %s1 = inlined_call_operand.vmem [shape: f32[16,32], index: 1, kind: input, shape index: {}]
  %s2 = inlined_call_operand.vmem [shape: f32[1,32], index: 2, kind: input, shape index: {}]
  %s3 = inlined_call_operand.vmem [shape: f32[32,64], index: 3, kind: input, shape index: {}]
  %s4 = inlined_call_operand.vmem [shape: f32[1,64], index: 4, kind: input, shape index: {}]
  %s5 = inlined_call_operand.vmem [shape: f32[64,4], index: 5, kind: input, shape index: {}]
  %s6 = inlined_call_operand.vmem [shape: f32[1,4], index: 6, kind: input, shape index: {}]
  %s7 = inlined_call_operand.hbm [shape: f32[2,4], index: 7, kind: output, shape index: {}]
  %s8 = sld [smem:[#allocation0]]
  $region38: #{network_forward.1} parent=0
    _
  %s10 = ssub.s32 1, %s8
  %s11 = scalar_select 0, %s10, %s8
  $region1: #{network_forward.1} parent=0
    #allocation2 [shape = 'u8[1024]{0}', space=vmem, size = 0x400, scoped, tag = 'output window, operand 0, single buffered']
    #allocation3 [shape = 's32[1]{0}', space=sflag, size = 0x4, scoped, tag = 'scoped memory for network_forward.1']
    %12 = vsyncpa [#allocation3], 0
    // Predicated region
    $region2: #{network_forward.1} parent=1 // pred_check
      _
    $region3: #{network_forward.1} parent=1 // pred_check_branch
      %14 = sbr.rel (0) target = $region5
    $region4: #{network_forward.1} parent=1 // pred_region
      _
    $region5: #{network_forward.1} parent=1 // pred_fallthru
      _
    // Predicated region
    $region6: #{network_forward.1} parent=1 // pred_check
      _
    $region7: #{network_forward.1} parent=1 // pred_check_branch
      %16 = sbr.rel (0) target = $region9
    $region8: #{network_forward.1} parent=1 // pred_region
      _
    $region9: #{network_forward.1} parent=1 // pred_fallthru
      _
    // Predicated region
    $region10: #{network_forward.1} parent=1 // pred_check
      _
    $region11: #{network_forward.1} parent=1 // pred_check_branch
      %18 = sbr.rel (0) target = $region13
    $region12: #{network_forward.1} parent=1 // pred_region
      _
    $region13: #{network_forward.1} parent=1 // pred_fallthru
      _
    // Predicated region
    $region14: #{network_forward.1} parent=1 // pred_check
      _
    $region15: #{network_forward.1} parent=1 // pred_check_branch
      %20 = sbr.rel (0) target = $region17
    $region16: #{network_forward.1} parent=1 // pred_region
      _
    $region17: #{network_forward.1} parent=1 // pred_fallthru
      _
    // Predicated region
    $region18: #{network_forward.1} parent=1 // pred_check
      _
    $region19: #{network_forward.1} parent=1 // pred_check_branch
      %22 = sbr.rel (0) target = $region21
    $region20: #{network_forward.1} parent=1 // pred_region
      _
    $region21: #{network_forward.1} parent=1 // pred_fallthru
      _
    // Predicated region
    $region22: #{network_forward.1} parent=1 // pred_check
      _
    $region23: #{network_forward.1} parent=1 // pred_check_branch
      %24 = sbr.rel (0) target = $region25
    $region24: #{network_forward.1} parent=1 // pred_region
      _
    $region25: #{network_forward.1} parent=1 // pred_fallthru
      _
    // Predicated region
    $region26: #{network_forward.1} parent=1 // pred_check
      _
    $region27: #{network_forward.1} parent=1 // pred_check_branch
      %26 = sbr.rel (0) target = $region29
    $region28: #{network_forward.1} parent=1 // pred_region
      _
    $region29: #{network_forward.1} parent=1 // pred_fallthru
      _
    %v27 = vld [vmem:[%s0] sm:$0x3]
    %v28 = vld [vmem:[%s1] sm:$0xff]
    %v29 = vld [vmem:[%s1 + $0x8] sm:$0xff]
    %v30 = vld [vmem:[%s2] sm:$0x1]
    %v32 = vlaneseq
    %v33 = vshrl.u32 %v32, 7
    %v34 = vsub.s32 0, %v33
    %v35 = vrot.slane %v30, %v34
    %vm37 = vcmask 130048
    %v39 = vsel %vm37, %v27, 0
    %41 = vmatprep.subr.mxu0 0.0
    %42 = vmatpush1.msra.mxu0 0.0
    %43 = vmatprep.subr.mxu0 0.0
    %44 = vmatpush1.msra.mxu0 0.0
    %45 = vmatprep.subr.mxu0 0.0
    %46 = vmatpush1.msra.mxu0 0.0
    %47 = vmatprep.subr.mxu0 0.0
    %48 = vmatpush1.msra.mxu0 0.0
    %49 = vmatprep.subr.mxu0 0.0
    %50 = vmatpush1.msra.mxu0 0.0
    %51 = vmatprep.subr.mxu0 0.0
    %52 = vmatpush1.msra.mxu0 0.0
    %53 = vmatprep.subr.mxu0 0.0
    %54 = vmatpush1.msra.mxu0 0.0
    %55 = vmatprep.subr.mxu0 0.0
    %56 = vmatpush1.msra.mxu0 0.0
    %57 = vmatprep.subr.mxu0 0.0
    %58 = vmatpush1.msra.mxu0 0.0
    %59 = vmatprep.subr.mxu0 0.0
    %60 = vmatpush1.msra.mxu0 0.0
    %61 = vmatprep.subr.mxu0 0.0
    %62 = vmatpush1.msra.mxu0 0.0
    %63 = vmatprep.subr.mxu0 0.0
    %64 = vmatpush1.msra.mxu0 0.0
    %65 = vmatprep.subr.mxu0 0.0
    %66 = vmatpush1.msra.mxu0 0.0
    %67 = vmatprep.subr.mxu0 0.0
    %68 = vmatpush1.msra.mxu0 0.0
    %69 = vmatprep.subr.mxu0 0.0
    %70 = vmatpush1.msra.mxu0 %v29
    %71 = vmatprep.subr.mxu0 0.0
    %72 = vmatpush1.msra.mxu0 %v28
    %73 = vmatprep.subr.mxu0 0.0
    %74 = vmatpush2.msra.mxu0 0.0
    %75 = vmatprep.subr.mxu0 0.0
    %76 = vmatpush2.msra.mxu0 0.0
    %77 = vmatprep.subr.mxu0 0.0
    %78 = vmatpush2.msra.mxu0 0.0
    %79 = vmatprep.subr.mxu0 0.0
    %80 = vmatpush2.msra.mxu0 0.0
    %81 = vmatprep.subr.mxu0 0.0
    %82 = vmatpush2.msra.mxu0 0.0
    %83 = vmatprep.subr.mxu0 0.0
    %84 = vmatpush2.msra.mxu0 0.0
    %85 = vmatprep.subr.mxu0 0.0
    %86 = vmatpush2.msra.mxu0 0.0
    %87 = vmatprep.subr.mxu0 0.0
    %88 = vmatpush2.msra.mxu0 0.0
    %89 = vmatprep.subr.mxu0 0.0
    %90 = vmatpush2.msra.mxu0 0.0
    %91 = vmatprep.subr.mxu0 0.0
    %92 = vmatpush2.msra.mxu0 0.0
    %93 = vmatprep.subr.mxu0 0.0
    %94 = vmatpush2.msra.mxu0 0.0
    %95 = vmatprep.subr.mxu0 0.0
    %96 = vmatpush2.msra.mxu0 0.0
    %97 = vmatprep.subr.mxu0 0.0
    %98 = vmatpush2.msra.mxu0 0.0
    %99 = vmatprep.subr.mxu0 0.0
    %100 = vmatpush2.msra.mxu0 0.0
    %101 = vmatprep.subr.mxu0 0.0
    %102 = vmatpush2.msra.mxu0 0.0
    %103 = vmatprep.subr.mxu0 0.0
    %104 = vmatpush2.msra.mxu0 0.0
    %105 = vmatprep.mubr.f32.mxu0 0.0
    %106 = vmatmul.mubr.f32.gmra.mxu0 %v39
    %v107 = vpop.f32.mrf.mxu0
    %v108 = vadd.f32 %v35, %v107
    %v109 = vpop.f32.mrf.mxu0
    %110 = vdwg.mxu0
    %v111 = vmax.f32 %v108, 0.0
    %v112 = vld [vmem:[%s3] sm:$0xff]
    %v113 = vld [vmem:[%s3 + $0x8] sm:$0xff]
    %v114 = vld [vmem:[%s3 + $0x10] sm:$0xff]
    %v115 = vld [vmem:[%s3 + $0x18] sm:$0xff]
    %v116 = vld [vmem:[%s4] sm:$0x1]
    %v118 = vlaneseq
    %v119 = vshrl.u32 %v118, 7
    %v120 = vsub.s32 0, %v119
    %v121 = vrot.slane %v116, %v120
    %vm123 = vcmask 261120
    %v125 = vsel %vm123, %v111, 0
    %127 = vmatprep.subr.mxu0 0.0
    %128 = vmatpush1.msra.mxu0 0.0
    %129 = vmatprep.subr.mxu0 0.0
    %130 = vmatpush1.msra.mxu0 0.0
    %131 = vmatprep.subr.mxu0 0.0
    %132 = vmatpush1.msra.mxu0 0.0
    %133 = vmatprep.subr.mxu0 0.0
    %134 = vmatpush1.msra.mxu0 0.0
    %135 = vmatprep.subr.mxu0 0.0
    %136 = vmatpush1.msra.mxu0 0.0
    %137 = vmatprep.subr.mxu0 0.0
    %138 = vmatpush1.msra.mxu0 0.0
    %139 = vmatprep.subr.mxu0 0.0
    %140 = vmatpush1.msra.mxu0 0.0
    %141 = vmatprep.subr.mxu0 0.0
    %142 = vmatpush1.msra.mxu0 0.0
    %143 = vmatprep.subr.mxu0 0.0
    %144 = vmatpush1.msra.mxu0 0.0
    %145 = vmatprep.subr.mxu0 0.0
    %146 = vmatpush1.msra.mxu0 0.0
    %147 = vmatprep.subr.mxu0 0.0
    %148 = vmatpush1.msra.mxu0 0.0
    %149 = vmatprep.subr.mxu0 0.0
    %150 = vmatpush1.msra.mxu0 0.0
    %151 = vmatprep.subr.mxu0 0.0
    %152 = vmatpush1.msra.mxu0 %v115
    %153 = vmatprep.subr.mxu0 0.0
    %154 = vmatpush1.msra.mxu0 %v114
    %155 = vmatprep.subr.mxu0 0.0
    %156 = vmatpush1.msra.mxu0 %v113
    %157 = vmatprep.subr.mxu0 0.0
    %158 = vmatpush1.msra.mxu0 %v112
    %159 = vmatprep.subr.mxu0 0.0
    %160 = vmatpush2.msra.mxu0 0.0
    %161 = vmatprep.subr.mxu0 0.0
    %162 = vmatpush2.msra.mxu0 0.0
    %163 = vmatprep.subr.mxu0 0.0
    %164 = vmatpush2.msra.mxu0 0.0
    %165 = vmatprep.subr.mxu0 0.0
    %166 = vmatpush2.msra.mxu0 0.0
    %167 = vmatprep.subr.mxu0 0.0
    %168 = vmatpush2.msra.mxu0 0.0
    %169 = vmatprep.subr.mxu0 0.0
    %170 = vmatpush2.msra.mxu0 0.0
    %171 = vmatprep.subr.mxu0 0.0
    %172 = vmatpush2.msra.mxu0 0.0
    %173 = vmatprep.subr.mxu0 0.0
    %174 = vmatpush2.msra.mxu0 0.0
    %175 = vmatprep.subr.mxu0 0.0
    %176 = vmatpush2.msra.mxu0 0.0
    %177 = vmatprep.subr.mxu0 0.0
    %178 = vmatpush2.msra.mxu0 0.0
    %179 = vmatprep.subr.mxu0 0.0
    %180 = vmatpush2.msra.mxu0 0.0
    %181 = vmatprep.subr.mxu0 0.0
    %182 = vmatpush2.msra.mxu0 0.0
    %183 = vmatprep.subr.mxu0 0.0
    %184 = vmatpush2.msra.mxu0 0.0
    %185 = vmatprep.subr.mxu0 0.0
    %186 = vmatpush2.msra.mxu0 0.0
    %187 = vmatprep.subr.mxu0 0.0
    %188 = vmatpush2.msra.mxu0 0.0
    %189 = vmatprep.subr.mxu0 0.0
    %190 = vmatpush2.msra.mxu0 0.0
    %191 = vmatprep.mubr.f32.mxu0 0.0
    %192 = vmatmul.mubr.f32.gmra.mxu0 %v125
    %v193 = vpop.f32.mrf.mxu0
    %v194 = vadd.f32 %v121, %v193
    %v195 = vpop.f32.mrf.mxu0
    %196 = vdwg.mxu0
    %v197 = vmax.f32 %v194, 0.0
    %v198 = vld [vmem:[%s5] sm:$0xff]
    %v199 = vld [vmem:[%s5 + $0x8] sm:$0xff]
    %v200 = vld [vmem:[%s5 + $0x10] sm:$0xff]
    %v201 = vld [vmem:[%s5 + $0x18] sm:$0xff]
    %v202 = vld [vmem:[%s5 + $0x20] sm:$0xff]
    %v203 = vld [vmem:[%s5 + $0x28] sm:$0xff]
    %v204 = vld [vmem:[%s5 + $0x30] sm:$0xff]
    %v205 = vld [vmem:[%s5 + $0x38] sm:$0xff]
    %v206 = vld [vmem:[%s6] sm:$0x1]
    %v208 = vlaneseq
    %v209 = vshrl.u32 %v208, 7
    %v210 = vsub.s32 0, %v209
    %v211 = vrot.slane %v206, %v210
    %vm213 = vcmask 523264
    %v215 = vsel %vm213, %v197, 0
    %217 = vmatprep.subr.mxu0 0.0
    %218 = vmatpush1.msra.mxu0 0.0
    %219 = vmatprep.subr.mxu0 0.0
    %220 = vmatpush1.msra.mxu0 0.0
    %221 = vmatprep.subr.mxu0 0.0
    %222 = vmatpush1.msra.mxu0 0.0
    %223 = vmatprep.subr.mxu0 0.0
    %224 = vmatpush1.msra.mxu0 0.0
    %225 = vmatprep.subr.mxu0 0.0
    %226 = vmatpush1.msra.mxu0 0.0
    %227 = vmatprep.subr.mxu0 0.0
    %228 = vmatpush1.msra.mxu0 0.0
    %229 = vmatprep.subr.mxu0 0.0
    %230 = vmatpush1.msra.mxu0 0.0
    %231 = vmatprep.subr.mxu0 0.0
    %232 = vmatpush1.msra.mxu0 0.0
    %233 = vmatprep.subr.mxu0 0.0
    %234 = vmatpush1.msra.mxu0 %v205
    %235 = vmatprep.subr.mxu0 0.0
    %236 = vmatpush1.msra.mxu0 %v204
    %237 = vmatprep.subr.mxu0 0.0
    %238 = vmatpush1.msra.mxu0 %v203
    %239 = vmatprep.subr.mxu0 0.0
    %240 = vmatpush1.msra.mxu0 %v202
    %241 = vmatprep.subr.mxu0 0.0
    %242 = vmatpush1.msra.mxu0 %v201
    %243 = vmatprep.subr.mxu0 0.0
    %244 = vmatpush1.msra.mxu0 %v200
    %245 = vmatprep.subr.mxu0 0.0
    %246 = vmatpush1.msra.mxu0 %v199
    %247 = vmatprep.subr.mxu0 0.0
    %248 = vmatpush1.msra.mxu0 %v198
    %249 = vmatprep.subr.mxu0 0.0
    %250 = vmatpush2.msra.mxu0 0.0
    %251 = vmatprep.subr.mxu0 0.0
    %252 = vmatpush2.msra.mxu0 0.0
    %253 = vmatprep.subr.mxu0 0.0
    %254 = vmatpush2.msra.mxu0 0.0
    %255 = vmatprep.subr.mxu0 0.0
    %256 = vmatpush2.msra.mxu0 0.0
    %257 = vmatprep.subr.mxu0 0.0
    %258 = vmatpush2.msra.mxu0 0.0
    %259 = vmatprep.subr.mxu0 0.0
    %260 = vmatpush2.msra.mxu0 0.0
    %261 = vmatprep.subr.mxu0 0.0
    %262 = vmatpush2.msra.mxu0 0.0
    %263 = vmatprep.subr.mxu0 0.0
    %264 = vmatpush2.msra.mxu0 0.0
    %265 = vmatprep.subr.mxu0 0.0
    %266 = vmatpush2.msra.mxu0 0.0
    %267 = vmatprep.subr.mxu0 0.0
    %268 = vmatpush2.msra.mxu0 0.0
    %269 = vmatprep.subr.mxu0 0.0
    %270 = vmatpush2.msra.mxu0 0.0
    %271 = vmatprep.subr.mxu0 0.0
    %272 = vmatpush2.msra.mxu0 0.0
    %273 = vmatprep.subr.mxu0 0.0
    %274 = vmatpush2.msra.mxu0 0.0
    %275 = vmatprep.subr.mxu0 0.0
    %276 = vmatpush2.msra.mxu0 0.0
    %277 = vmatprep.subr.mxu0 0.0
    %278 = vmatpush2.msra.mxu0 0.0
    %279 = vmatprep.subr.mxu0 0.0
    %280 = vmatpush2.msra.mxu0 0.0
    %281 = vmatprep.mubr.f32.mxu0 0.0
    %282 = vmatmul.mubr.f32.gmra.mxu0 %v215
    %v283 = vpop.f32.mrf.mxu0
    %v284 = vadd.f32 %v211, %v283
    %v285 = vpop.f32.mrf.mxu0
    %286 = vdwg.mxu0
    %vm287 = vcmask 25600
    %288 = vst.msk [vmem:[#allocation2] sm:$0x3] %vm287, %v284
    // Predicated region
    $region30: #{network_forward.1} parent=1 // pred_check
      _
    $region31: #{network_forward.1} parent=1 // pred_check_branch
      %290 = sbr.rel (0) target = $region33
    $region32: #{network_forward.1} parent=1 // pred_region
      %s292 = ssub.s32 32, 32
      %293 = vsyncadd [#allocation3], %s292
      %s295 = sshll.u32 [#allocation2], 4
      %s296 = int_to_ptr.vmem [resolvable:$true] %s295
      %298 = dma.vmem_to_hbm [thread:$0]  %s296, 32, %s7, [#allocation3]
    $region33: #{network_forward.1} parent=1 // pred_fallthru
      _
    // Predicated region
    $region34: #{network_forward.1} parent=1 // pred_check
      _
    $region35: #{network_forward.1} parent=1 // pred_check_branch
      %300 = sbr.rel (0) target = $region37
    $region36: #{network_forward.1} parent=1 // pred_region
      %301 = dma.done [#allocation3], 32
    $region37: #{network_forward.1} parent=1 // pred_fallthru
      _
    %302 = vsyncpa [#allocation3], 1

</llo_original>
